<compile_context>
chip_gen: v5e
topology: v5e:2x2
jax: 0.10.0
libtpu: 0.0.40
codegen_flags: <defaults>
</compile_context>

<pallas_src>
import functools

import jax
import jax.numpy as jnp
from jax.experimental import pallas as pl
from jax.experimental.pallas import tpu as pltpu


def _pinn_kernel(num_hidden, input_dim,
                 t_ref, w_in_ref, b_in_ref, w_h_ref, b_h_ref,
                 w_out_ref, b_out_ref, o_ref):
    # t_ref:     (input_dim, B)     -- batch on lanes
    # w_in_ref:  (Hp, input_dim)    b_in_ref: (Hp, 1)
    # w_h_ref:   (L, Hp, Hp)        b_h_ref:  (L, Hp, 1)
    # w_out_ref: (Dout, Hp)         b_out_ref:(Dout, 1)
    # o_ref:     (Dout, B)
    t = t_ref[...]

    # ---- input layer + tanh ----
    if input_dim == 1:
        # rank-1 contraction -> pure VPU broadcast multiply (skip MXU pass)
        z = w_in_ref[...] * t + b_in_ref[...]                 # (Hp,1)*(1,B)+(Hp,1)
    else:
        z = (jnp.dot(w_in_ref[...], t, preferred_element_type=jnp.float32)
             + b_in_ref[...])
    u = jnp.tanh(z)

    # ---- hidden layers + tanh (num_hidden is a static Python int) ----
    # TODO(synk): for very deep PINNs (num_hidden >> 8) switch to lax.fori_loop.
    for h in range(num_hidden):
        u = jnp.tanh(
            jnp.dot(w_h_ref[h], u.astype(w_h_ref.dtype),
                    preferred_element_type=jnp.float32)
            + b_h_ref[h])

    # ---- output layer (no activation), lane-dense store ----
    o = (jnp.dot(w_out_ref[...], u.astype(w_out_ref.dtype),
                 preferred_element_type=jnp.float32)
         + b_out_ref[...])
    o_ref[...] = o.astype(o_ref.dtype)


def _pad_axis(x, axis, size):
    extra = size - x.shape[axis]
    if extra == 0:
        return x
    widths = [(0, 0)] * x.ndim
    widths[axis] = (0, extra)
    return jnp.pad(x, widths)


def pinn_forward(t, params, *, batch_tile=1024, dtype=jnp.float32):
    """PINN forward pass with a Pallas TPU kernel.

    t: (N, input_dim) float32, N divisible by the (clamped) batch_tile.
    params: dict with torch-oriented weights
        w_in (H, Din), b_in (H,), w_h (L, H, H), b_h (L, H),
        w_out (Dout, H), b_out (Dout,).
    dtype: compute dtype for weights/activations (use jnp.bfloat16 on v6e/v7x;
        keep float32 on v5e).  Accumulation is always f32.
    """
    w_in, b_in = params["w_in"], params["b_in"]
    w_h, b_h = params["w_h"], params["b_h"]
    w_out, b_out = params["w_out"], params["b_out"]

    n, input_dim = t.shape
    hidden_dim = w_in.shape[0]
    output_dim = w_out.shape[0]
    num_hidden = w_h.shape[0]

    batch_tile = min(batch_tile, n)
    assert batch_tile % 128 == 0, "batch_tile must be a multiple of 128"
    assert n % batch_tile == 0, "N must be divisible by batch_tile"

    # Pad hidden dim to the lane width so all tiles are (8,128)-aligned.
    hp = ((hidden_dim + 127) // 128) * 128

    w_in_p = _pad_axis(w_in, 0, hp).astype(dtype)                           # (hp, Din)
    b_in_p = _pad_axis(b_in.reshape(hidden_dim, 1), 0, hp).astype(dtype)    # (hp, 1)
    w_h_p = _pad_axis(_pad_axis(w_h, 1, hp), 2, hp).astype(dtype)           # (L, hp, hp)
    b_h_p = _pad_axis(b_h.reshape(num_hidden, hidden_dim, 1), 1,
                      hp).astype(dtype)                                     # (L, hp, 1)
    w_out_p = _pad_axis(w_out, 1, hp).astype(dtype)                         # (Dout, hp)
    b_out_p = b_out.reshape(output_dim, 1).astype(dtype)                    # (Dout, 1)
    t_t = t.T.astype(dtype)                                                 # (Din, N)

    grid = (n // batch_tile,)
    kernel = functools.partial(_pinn_kernel, num_hidden, input_dim)

    itemsize = jnp.dtype(dtype).itemsize
    flops = 2 * n * (hp * input_dim + num_hidden * hp * hp + output_dim * hp)
    transcendentals = n * hp * (num_hidden + 1)
    bytes_accessed = itemsize * (
        t_t.size + w_in_p.size + b_in_p.size + w_h_p.size + b_h_p.size
        + w_out_p.size + b_out_p.size) + 4 * n * output_dim

    out_t = pl.pallas_call(
        kernel,
        out_shape=jax.ShapeDtypeStruct((output_dim, n), jnp.float32),
        grid_spec=pltpu.PrefetchScalarGridSpec(
            num_scalar_prefetch=0,
            grid=grid,
            in_specs=[
                # batch-tiled transposed input (lane-dense)
                pl.BlockSpec((input_dim, batch_tile), lambda i: (0, i)),
                # parameters: full blocks, constant index -> resident
                pl.BlockSpec((hp, input_dim), lambda i: (0, 0)),
                pl.BlockSpec((hp, 1), lambda i: (0, 0)),
                pl.BlockSpec((num_hidden, hp, hp), lambda i: (0, 0, 0)),
                pl.BlockSpec((num_hidden, hp, 1), lambda i: (0, 0, 0)),
                pl.BlockSpec((output_dim, hp), lambda i: (0, 0)),
                pl.BlockSpec((output_dim, 1), lambda i: (0, 0)),
            ],
            out_specs=pl.BlockSpec((output_dim, batch_tile),
                                   lambda i: (0, i)),
        ),
        compiler_params=pltpu.CompilerParams(
            dimension_semantics=("parallel",)),
        cost_estimate=pl.CostEstimate(
            flops=flops,
            transcendentals=transcendentals,
            bytes_accessed=bytes_accessed),
    )(t_t, w_in_p, b_in_p, w_h_p, b_h_p, w_out_p, b_out_p)

    return out_t.T  # (N, Dout)


def init_pinn_params(key, input_dim=1, hidden_dim=20, output_dim=1,
                     num_hidden=1):
    """nn.Linear-style init (uniform +-1/sqrt(fan_in)), torch (out,in) layout."""
    keys = jax.random.split(key, 6)

    def unif(k, shape, fan_in):
        bound = 1.0 / jnp.sqrt(jnp.float32(fan_in))
        return jax.random.uniform(k, shape, jnp.float32, -bound, bound)

    return {
        "w_in": unif(keys[0], (hidden_dim, input_dim), input_dim),
        "b_in": unif(keys[1], (hidden_dim,), input_dim),
        "w_h": unif(keys[2], (num_hidden, hidden_dim, hidden_dim), hidden_dim),
        "b_h": unif(keys[3], (num_hidden, hidden_dim), hidden_dim),
        "w_out": unif(keys[4], (output_dim, hidden_dim), hidden_dim),
        "b_out": unif(keys[5], (output_dim,), hidden_dim),
    }


def pinn_forward_ref(t, params):
    """Pure-JAX reference of the same forward pass (for verification)."""
    u = jnp.tanh(t @ params["w_in"].T + params["b_in"])
    for h in range(params["w_h"].shape[0]):
        u = jnp.tanh(u @ params["w_h"][h].T + params["b_h"][h])
    return u @ params["w_out"].T + params["b_out"]


if __name__ == "__main__":
    key = jax.random.PRNGKey(0)
    pkey, tkey = jax.random.split(key)

    input_dim, hidden_dim, output_dim, num_hidden = 1, 20, 1, 1
    params = init_pinn_params(pkey, input_dim, hidden_dim, output_dim,
                              num_hidden)

    # Collocation points t in [0, 1], shape (N, 1).
    n = 512
    t = jax.random.uniform(tkey, (n, input_dim), jnp.float32, 0.0, 1.0)

    # batch_tile=256 -> grid of 2 (gives v7x's 2 TensorCores something each).
    out = pinn_forward(t, params, batch_tile=256)
    out = jax.block_until_ready(out)

    ref = pinn_forward_ref(t, params)
    assert out.shape == (n, output_dim)
    assert jnp.allclose(out, ref, atol=1e-5, rtol=1e-5)

    print("KERNEL_OK")
</pallas_src>

<mosaic_0001>
module attributes {stable_mosaic.version = 11 : i64} {
  func.func @_pinn_kernel(%arg0: i32, %arg1: memref<1x256xf32, #tpu.memory_space<vmem>>, %arg2: memref<128x1xf32, #tpu.memory_space<vmem>>, %arg3: memref<128x1xf32, #tpu.memory_space<vmem>>, %arg4: memref<1x128x128xf32, #tpu.memory_space<vmem>>, %arg5: memref<1x128x1xf32, #tpu.memory_space<vmem>>, %arg6: memref<1x128xf32, #tpu.memory_space<vmem>>, %arg7: memref<1x1xf32, #tpu.memory_space<vmem>>, %arg8: memref<1x256xf32, #tpu.memory_space<vmem>>) attributes {dimension_semantics = [#tpu.dimension_semantics<parallel>], iteration_bounds = array<i64: 2>, scalar_prefetch = 0 : i64, scratch_operands = 0 : i64, tpu.core_type = #tpu.core_type<tc>, window_params = [{transform_indices = @transform_0, window_bounds = array<i64: 1, 256>}, {pipeline_mode = #tpu.pipeline_mode<synchronous>, transform_indices = @transform_1, window_bounds = array<i64: 128, 1>}, {pipeline_mode = #tpu.pipeline_mode<synchronous>, transform_indices = @transform_2, window_bounds = array<i64: 128, 1>}, {pipeline_mode = #tpu.pipeline_mode<synchronous>, transform_indices = @transform_3, window_bounds = array<i64: 1, 128, 128>}, {pipeline_mode = #tpu.pipeline_mode<synchronous>, transform_indices = @transform_4, window_bounds = array<i64: 1, 128, 1>}, {pipeline_mode = #tpu.pipeline_mode<synchronous>, transform_indices = @transform_5, window_bounds = array<i64: 1, 128>}, {pipeline_mode = #tpu.pipeline_mode<synchronous>, transform_indices = @transform_6, window_bounds = array<i64: 1, 1>}, {transform_indices = @transform_7, window_bounds = array<i64: 1, 256>}]} {
    %c0 = arith.constant 0 : index
    %c0_0 = arith.constant 0 : index
    %0 = vector.load %arg1[%c0, %c0_0] : memref<1x256xf32, #tpu.memory_space<vmem>>, vector<1x256xf32>
    %c0_1 = arith.constant 0 : index
    %c0_2 = arith.constant 0 : index
    %1 = vector.load %arg2[%c0_1, %c0_2] : memref<128x1xf32, #tpu.memory_space<vmem>>, vector<128x1xf32>
    %2 = vector.broadcast %1 : vector<128x1xf32> to vector<128x256xf32>
    %3 = vector.broadcast %0 : vector<1x256xf32> to vector<128x256xf32>
    %4 = arith.mulf %2, %3 : vector<128x256xf32>
    %c0_3 = arith.constant 0 : index
    %c0_4 = arith.constant 0 : index
    %5 = vector.load %arg3[%c0_3, %c0_4] : memref<128x1xf32, #tpu.memory_space<vmem>>, vector<128x1xf32>
    %6 = vector.broadcast %5 : vector<128x1xf32> to vector<128x256xf32>
    %7 = arith.addf %4, %6 : vector<128x256xf32>
    %8 = math.tanh %7 : vector<128x256xf32>
    %c0_5 = arith.constant 0 : index
    %c0_6 = arith.constant 0 : index
    %c0_7 = arith.constant 0 : index
    %9 = vector.load %arg4[%c0_5, %c0_6, %c0_7] : memref<1x128x128xf32, #tpu.memory_space<vmem>>, vector<1x128x128xf32>
    %10 = vector.shape_cast %9 : vector<1x128x128xf32> to vector<128x128xf32>
    %cst = arith.constant dense<0.000000e+00> : vector<128x256xf32>
    %11 = tpu.matmul %10, %8, %cst {dimension_numbers = #tpu.dot_dimension_numbers<[1], [0], [0], [1], [0, 0, 1, 1], [], []>} : vector<128x128xf32>, vector<128x256xf32>, vector<128x256xf32> -> vector<128x256xf32>
    %c0_8 = arith.constant 0 : index
    %c0_9 = arith.constant 0 : index
    %c0_10 = arith.constant 0 : index
    %12 = vector.load %arg5[%c0_8, %c0_9, %c0_10] : memref<1x128x1xf32, #tpu.memory_space<vmem>>, vector<1x128x1xf32>
    %13 = vector.shape_cast %12 : vector<1x128x1xf32> to vector<128x1xf32>
    %14 = vector.broadcast %13 : vector<128x1xf32> to vector<128x256xf32>
    %15 = arith.addf %11, %14 : vector<128x256xf32>
    %16 = math.tanh %15 : vector<128x256xf32>
    %c0_11 = arith.constant 0 : index
    %c0_12 = arith.constant 0 : index
    %17 = vector.load %arg6[%c0_11, %c0_12] : memref<1x128xf32, #tpu.memory_space<vmem>>, vector<1x128xf32>
    %cst_13 = arith.constant dense<0.000000e+00> : vector<1x256xf32>
    %18 = tpu.matmul %17, %16, %cst_13 {dimension_numbers = #tpu.dot_dimension_numbers<[1], [0], [0], [1], [0, 0, 1, 1], [], []>} : vector<1x128xf32>, vector<128x256xf32>, vector<1x256xf32> -> vector<1x256xf32>
    %c0_14 = arith.constant 0 : index
    %c0_15 = arith.constant 0 : index
    %19 = vector.load %arg7[%c0_14, %c0_15] : memref<1x1xf32, #tpu.memory_space<vmem>>, vector<1x1xf32>
    %20 = vector.broadcast %19 : vector<1x1xf32> to vector<1x256xf32>
    %21 = arith.addf %18, %20 : vector<1x256xf32>
    %c0_16 = arith.constant 0 : index
    %c0_17 = arith.constant 0 : index
    %22 = vector.load %arg8[%c0_16, %c0_17] : memref<1x256xf32, #tpu.memory_space<vmem>>, vector<1x256xf32>
    tpu.vector_store %arg8[%c0_16, %c0_17], %21 {strides = array<i32>} : memref<1x256xf32, #tpu.memory_space<vmem>>, vector<1x256xf32>,
    return
  }
  func.func @transform_0(%arg0: i32) -> (i32, i32) {
    %c0_i32 = arith.constant 0 : i32
    %c0_i32_0 = arith.constant 0 : i32
    return %c0_i32, %arg0 : i32, i32
  }
  func.func @transform_1(%arg0: i32) -> (i32, i32) {
    %c0_i32 = arith.constant 0 : i32
    %c0_i32_0 = arith.constant 0 : i32
    %c0_i32_1 = arith.constant 0 : i32
    return %c0_i32, %c0_i32_0 : i32, i32
  }
  func.func @transform_2(%arg0: i32) -> (i32, i32) {
    %c0_i32 = arith.constant 0 : i32
    %c0_i32_0 = arith.constant 0 : i32
    %c0_i32_1 = arith.constant 0 : i32
    return %c0_i32, %c0_i32_0 : i32, i32
  }
  func.func @transform_3(%arg0: i32) -> (i32, i32, i32) {
    %c0_i32 = arith.constant 0 : i32
    %c0_i32_0 = arith.constant 0 : i32
    %c0_i32_1 = arith.constant 0 : i32
    %c0_i32_2 = arith.constant 0 : i32
    return %c0_i32, %c0_i32_0, %c0_i32_1 : i32, i32, i32
  }
  func.func @transform_4(%arg0: i32) -> (i32, i32, i32) {
    %c0_i32 = arith.constant 0 : i32
    %c0_i32_0 = arith.constant 0 : i32
    %c0_i32_1 = arith.constant 0 : i32
    %c0_i32_2 = arith.constant 0 : i32
    return %c0_i32, %c0_i32_0, %c0_i32_1 : i32, i32, i32
  }
  func.func @transform_5(%arg0: i32) -> (i32, i32) {
    %c0_i32 = arith.constant 0 : i32
    %c0_i32_0 = arith.constant 0 : i32
    %c0_i32_1 = arith.constant 0 : i32
    return %c0_i32, %c0_i32_0 : i32, i32
  }
  func.func @transform_6(%arg0: i32) -> (i32, i32) {
    %c0_i32 = arith.constant 0 : i32
    %c0_i32_0 = arith.constant 0 : i32
    %c0_i32_1 = arith.constant 0 : i32
    return %c0_i32, %c0_i32_0 : i32, i32
  }
  func.func @transform_7(%arg0: i32) -> (i32, i32) {
    %c0_i32 = arith.constant 0 : i32
    %c0_i32_0 = arith.constant 0 : i32
    return %c0_i32, %arg0 : i32, i32
  }
}

</mosaic_0001>

<llo_original>
// kernel: tpu_custom_call.1
$region0: #{tpu_custom_call.1}
  #allocation0 [shape = 'u32[]', space=smem, size = 0x4, offset = 0x4, fixed_abs, tag = 'smem constant byte address 0x4 - core index']
  #allocation1 [shape = 'u32[72,128]{1,0:T(1,128)}', space=vmem, size = 0x9000, scoped, tag = 'internal scratch']
  #allocation2 [shape = 'f32[1,1]{1,0:T(1,128)S(1)}', space=vmem, size = 0x200, scoped, tag = 'scoped memory for tpu_custom_call.1']
  %s0 = inlined_call_operand.vmem [shape: f32[1,512], index: 0, kind: input, shape index: {}]
  %s1 = inlined_call_operand.vmem [shape: f32[128,1], index: 1, kind: input, shape index: {}]
  %s2 = inlined_call_operand.vmem [shape: f32[128,1], index: 2, kind: input, shape index: {}]
  %s3 = inlined_call_operand.vmem [shape: f32[1,128,128], index: 3, kind: input, shape index: {}]
  %s4 = inlined_call_operand.vmem [shape: f32[1,128,1], index: 4, kind: input, shape index: {}]
  %s5 = inlined_call_operand.vmem [shape: f32[1,128], index: 5, kind: input, shape index: {}]
  %s6 = inlined_call_operand.<no memory space> [shape: f32[1,1], index: 6, kind: input, shape index: {}]
  %s7 = inlined_call_operand.hbm [shape: f32[1,512], index: 7, kind: output, shape index: {}]
  %s8 = sld [smem:[#allocation0]]
  $region61: #{tpu_custom_call.1} parent=0
    _
  %s10 = ssub.s32 1, %s8
  %s11 = scalar_select 0, %s10, %s8
  %v12 = vstv %s6
  %13 = vst [vmem:[#allocation2] sm:$0x1] %v12
  $region1: #{tpu_custom_call.1} parent=0
    #allocation3 [shape = 'u8[2048]{0}', space=vmem, size = 0x800, scoped, tag = 'output window, operand 0']
    #allocation4 [shape = 's32[2]{0}', space=sflag, size = 0x8, scoped, tag = 'scoped memory for tpu_custom_call.1']
    %14 = vsyncpa [#allocation4], 0
    %s15 = scalar_lea.sflag [#allocation4], 1
    %16 = vsyncpa %s15, 0
    loop: start=0, step=1, limit=4
    $region2: #{tpu_custom_call.1} parent=1 // loop_pre_header
      _
    $region3: #{tpu_custom_call.1} parent=1 // loop_header
      %s18 = sphi 0, %s22
      %p19 = scmp.ge.s32.totalorder %s18, 4
      %s28 = sphi 0, %s30
      %s31 = sphi 0, %s28
      %s32 = sphi 0, %s31
      %s48 = sphi 0, %s32
      %s52 = sphi 0, %s52
      %s54 = sphi 0, %s52
      %s55 = sphi 0, %s54
      %s69 = sphi 0, %s55
      %s73 = sphi 0, %s73
      %s75 = sphi 0, %s73
      %s76 = sphi 0, %s75
      %s90 = sphi 0, %s76
      %s94 = sphi 0, %s94
      %s96 = sphi 0, %s94
      %s97 = sphi 0, %s96
      %s111 = sphi 0, %s97
      %s115 = sphi 0, %s115
      %s117 = sphi 0, %s115
      %s118 = sphi 0, %s117
      %s132 = sphi 0, %s118
      %s136 = sphi 0, %s136
      %s138 = sphi 0, %s136
      %s139 = sphi 0, %s138
      %s153 = sphi 0, %s139
      %s157 = sphi 0, %s157
      %s159 = sphi 0, %s157
      %s160 = sphi 0, %s159
      %s174 = sphi 0, %s160
      %s180 = sphi 0, %s182
      %s183 = sphi 0, %s180
      %s184 = sphi 0, %s183
      %s200 = sphi 0, %s184
    $region4: #{tpu_custom_call.1} parent=1 // loop_header_branch
      %21 = sbr.rel (%p19) target = $region8
    $region5: #{tpu_custom_call.1} parent=1 // loop_body
      %s23 = ssub.s32 %s18, 1
      %s24 = ssub.s32 %s18, 2
      %s25 = sadd.s32 %s18, 1
      %s26 = ssub.s32 %s18, %s25
      %p27 = scmp.eq.s32.totalorder %s26, 0
      %s29 = sadd.s32 %s28, 1
      %s30 = scalar_select %p27, %s28, %s29
      %p33 = pneg %p27
      %p34 = scmp.eq.s32.totalorder %s18, 1
      %p35 = por %p33, %p34
      %p36 = scmp.ne.s32.totalorder %s28, %s31
      %p37 = scmp.eq.s32.totalorder %s18, 0
      %p38 = por %p36, %p37
      %p39 = scmp.ne.s32.totalorder %s28, %s31
      %p40 = scmp.eq.s32.totalorder %s23, 1
      %p41 = por %p39, %p40
      %p42 = scmp.ne.s32.totalorder %s31, %s32
      %p43 = scmp.eq.s32.totalorder %s23, 0
      %p44 = por %p42, %p43
      %p45 = scmp.ne.s32.totalorder %s31, %s32
      %p46 = scmp.eq.s32.totalorder %s24, 1
      %p47 = por %p45, %p46
      %p49 = scmp.ne.s32.totalorder %s32, %s48
      %p50 = scmp.eq.s32.totalorder %s24, 0
      %p51 = por %p49, %p50
      %s53 = sadd.s32 %s52, 1
      %p56 = scmp.eq.s32.totalorder %s18, 1
      %p57 = scmp.ne.s32.totalorder %s52, %s54
      %p58 = scmp.eq.s32.totalorder %s18, 0
      %p59 = por %p57, %p58
      %p60 = scmp.ne.s32.totalorder %s52, %s54
      %p61 = scmp.eq.s32.totalorder %s23, 1
      %p62 = por %p60, %p61
      %p63 = scmp.ne.s32.totalorder %s54, %s55
      %p64 = scmp.eq.s32.totalorder %s23, 0
      %p65 = por %p63, %p64
      %p66 = scmp.ne.s32.totalorder %s54, %s55
      %p67 = scmp.eq.s32.totalorder %s24, 1
      %p68 = por %p66, %p67
      %p70 = scmp.ne.s32.totalorder %s55, %s69
      %p71 = scmp.eq.s32.totalorder %s24, 0
      %p72 = por %p70, %p71
      %s74 = sadd.s32 %s73, 1
      %p77 = scmp.eq.s32.totalorder %s18, 1
      %p78 = scmp.ne.s32.totalorder %s73, %s75
      %p79 = scmp.eq.s32.totalorder %s18, 0
      %p80 = por %p78, %p79
      %p81 = scmp.ne.s32.totalorder %s73, %s75
      %p82 = scmp.eq.s32.totalorder %s23, 1
      %p83 = por %p81, %p82
      %p84 = scmp.ne.s32.totalorder %s75, %s76
      %p85 = scmp.eq.s32.totalorder %s23, 0
      %p86 = por %p84, %p85
      %p87 = scmp.ne.s32.totalorder %s75, %s76
      %p88 = scmp.eq.s32.totalorder %s24, 1
      %p89 = por %p87, %p88
      %p91 = scmp.ne.s32.totalorder %s76, %s90
      %p92 = scmp.eq.s32.totalorder %s24, 0
      %p93 = por %p91, %p92
      %s95 = sadd.s32 %s94, 1
      %p98 = scmp.eq.s32.totalorder %s18, 1
      %p99 = scmp.ne.s32.totalorder %s94, %s96
      %p100 = scmp.eq.s32.totalorder %s18, 0
      %p101 = por %p99, %p100
      %p102 = scmp.ne.s32.totalorder %s94, %s96
      %p103 = scmp.eq.s32.totalorder %s23, 1
      %p104 = por %p102, %p103
      %p105 = scmp.ne.s32.totalorder %s96, %s97
      %p106 = scmp.eq.s32.totalorder %s23, 0
      %p107 = por %p105, %p106
      %p108 = scmp.ne.s32.totalorder %s96, %s97
      %p109 = scmp.eq.s32.totalorder %s24, 1
      %p110 = por %p108, %p109
      %p112 = scmp.ne.s32.totalorder %s97, %s111
      %p113 = scmp.eq.s32.totalorder %s24, 0
      %p114 = por %p112, %p113
      %s116 = sadd.s32 %s115, 1
      %p119 = scmp.eq.s32.totalorder %s18, 1
      %p120 = scmp.ne.s32.totalorder %s115, %s117
      %p121 = scmp.eq.s32.totalorder %s18, 0
      %p122 = por %p120, %p121
      %p123 = scmp.ne.s32.totalorder %s115, %s117
      %p124 = scmp.eq.s32.totalorder %s23, 1
      %p125 = por %p123, %p124
      %p126 = scmp.ne.s32.totalorder %s117, %s118
      %p127 = scmp.eq.s32.totalorder %s23, 0
      %p128 = por %p126, %p127
      %p129 = scmp.ne.s32.totalorder %s117, %s118
      %p130 = scmp.eq.s32.totalorder %s24, 1
      %p131 = por %p129, %p130
      %p133 = scmp.ne.s32.totalorder %s118, %s132
      %p134 = scmp.eq.s32.totalorder %s24, 0
      %p135 = por %p133, %p134
      %s137 = sadd.s32 %s136, 1
      %p140 = scmp.eq.s32.totalorder %s18, 1
      %p141 = scmp.ne.s32.totalorder %s136, %s138
      %p142 = scmp.eq.s32.totalorder %s18, 0
      %p143 = por %p141, %p142
      %p144 = scmp.ne.s32.totalorder %s136, %s138
      %p145 = scmp.eq.s32.totalorder %s23, 1
      %p146 = por %p144, %p145
      %p147 = scmp.ne.s32.totalorder %s138, %s139
      %p148 = scmp.eq.s32.totalorder %s23, 0
      %p149 = por %p147, %p148
      %p150 = scmp.ne.s32.totalorder %s138, %s139
      %p151 = scmp.eq.s32.totalorder %s24, 1
      %p152 = por %p150, %p151
      %p154 = scmp.ne.s32.totalorder %s139, %s153
      %p155 = scmp.eq.s32.totalorder %s24, 0
      %p156 = por %p154, %p155
      %s158 = sadd.s32 %s157, 1
      %p161 = scmp.eq.s32.totalorder %s18, 1
      %p162 = scmp.ne.s32.totalorder %s157, %s159
      %p163 = scmp.eq.s32.totalorder %s18, 0
      %p164 = por %p162, %p163
      %p165 = scmp.ne.s32.totalorder %s157, %s159
      %p166 = scmp.eq.s32.totalorder %s23, 1
      %p167 = por %p165, %p166
      %p168 = scmp.ne.s32.totalorder %s159, %s160
      %p169 = scmp.eq.s32.totalorder %s23, 0
      %p170 = por %p168, %p169
      %p171 = scmp.ne.s32.totalorder %s159, %s160
      %p172 = scmp.eq.s32.totalorder %s24, 1
      %p173 = por %p171, %p172
      %p175 = scmp.ne.s32.totalorder %s160, %s174
      %p176 = scmp.eq.s32.totalorder %s24, 0
      %p177 = por %p175, %p176
      %s178 = ssub.s32 %s18, %s25
      %p179 = scmp.eq.s32.totalorder %s178, 0
      %s181 = sadd.s32 %s180, 1
      %s182 = scalar_select %p179, %s180, %s181
      %p185 = pneg %p179
      %p186 = scmp.eq.s32.totalorder %s18, 1
      %p187 = por %p185, %p186
      %p188 = scmp.ne.s32.totalorder %s180, %s183
      %p189 = scmp.eq.s32.totalorder %s18, 0
      %p190 = por %p188, %p189
      %p191 = scmp.ne.s32.totalorder %s180, %s183
      %p192 = scmp.eq.s32.totalorder %s23, 1
      %p193 = por %p191, %p192
      %p194 = scmp.ne.s32.totalorder %s183, %s184
      %p195 = scmp.eq.s32.totalorder %s23, 0
      %p196 = por %p194, %p195
      %p197 = scmp.ne.s32.totalorder %s183, %s184
      %p198 = scmp.eq.s32.totalorder %s24, 1
      %p199 = por %p197, %p198
      %p201 = scmp.ne.s32.totalorder %s184, %s200
      %p202 = scmp.eq.s32.totalorder %s24, 0
      %p203 = por %p201, %p202
      %p204 = scmp.le.s32.totalorder 1, %s18
      %p205 = scmp.lt.s32.totalorder %s18, 3
      %p206 = pnand %p204, %p205
      %p207 = pneg %p206
      // Predicated region
      $region9: #{tpu_custom_call.1} parent=5 // pred_check
        _
      $region10: #{tpu_custom_call.1} parent=5 // pred_check_branch
        %209 = sbr.rel (%p206) target = $region12
      $region11: #{tpu_custom_call.1} parent=5 // pred_region
        %s210 = ssub.s32 %s18, 1
        // Predicated region
        $region13: #{tpu_custom_call.1} parent=11 // pred_check
          %p211 = pneg %p65
        $region14: #{tpu_custom_call.1} parent=11 // pred_check_branch
          %213 = sbr.rel (%p211) target = $region16
        $region15: #{tpu_custom_call.1} parent=11 // pred_region
          _
        $region16: #{tpu_custom_call.1} parent=11 // pred_fallthru
          _
        // Predicated region
        $region17: #{tpu_custom_call.1} parent=11 // pred_check
          %p214 = pneg %p86
        $region18: #{tpu_custom_call.1} parent=11 // pred_check_branch
          %216 = sbr.rel (%p214) target = $region20
        $region19: #{tpu_custom_call.1} parent=11 // pred_region
          _
        $region20: #{tpu_custom_call.1} parent=11 // pred_fallthru
          _
        // Predicated region
        $region21: #{tpu_custom_call.1} parent=11 // pred_check
          %p217 = pneg %p107
        $region22: #{tpu_custom_call.1} parent=11 // pred_check_branch
          %219 = sbr.rel (%p217) target = $region24
        $region23: #{tpu_custom_call.1} parent=11 // pred_region
          _
        $region24: #{tpu_custom_call.1} parent=11 // pred_fallthru
          _
        // Predicated region
        $region25: #{tpu_custom_call.1} parent=11 // pred_check
          %p220 = pneg %p128
        $region26: #{tpu_custom_call.1} parent=11 // pred_check_branch
          %222 = sbr.rel (%p220) target = $region28
        $region27: #{tpu_custom_call.1} parent=11 // pred_region
          _
        $region28: #{tpu_custom_call.1} parent=11 // pred_fallthru
          _
        // Predicated region
        $region29: #{tpu_custom_call.1} parent=11 // pred_check
          %p223 = pneg %p149
        $region30: #{tpu_custom_call.1} parent=11 // pred_check_branch
          %225 = sbr.rel (%p223) target = $region32
        $region31: #{tpu_custom_call.1} parent=11 // pred_region
          _
        $region32: #{tpu_custom_call.1} parent=11 // pred_fallthru
          _
        // Predicated region
        $region33: #{tpu_custom_call.1} parent=11 // pred_check
          %p226 = pneg %p170
        $region34: #{tpu_custom_call.1} parent=11 // pred_check_branch
          %228 = sbr.rel (%p226) target = $region36
        $region35: #{tpu_custom_call.1} parent=11 // pred_region
          _
        $region36: #{tpu_custom_call.1} parent=11 // pred_fallthru
          _
      $region12: #{tpu_custom_call.1} parent=5 // pred_fallthru
        _
      %p229 = scmp.lt.s32.totalorder %s18, 2
      // Predicated region
      $region37: #{tpu_custom_call.1} parent=5 // pred_check
        %p230 = pneg %p229
      $region38: #{tpu_custom_call.1} parent=5 // pred_check_branch
        %232 = sbr.rel (%p230) target = $region40
      $region39: #{tpu_custom_call.1} parent=5 // pred_region
        // Predicated region
        $region41: #{tpu_custom_call.1} parent=39 // pred_check
          %p233 = pneg %p38
        $region42: #{tpu_custom_call.1} parent=39 // pred_check_branch
          %235 = sbr.rel (%p233) target = $region44
        $region43: #{tpu_custom_call.1} parent=39 // pred_region
          %s236 = smul.u32 2, %s18
          %p237 = scmp.lt.s32.totalorder %s236, 3
          %s238 = scalar_select %p237, %s236, 3
          %s239 = scalar_lea.vmem %s0, %s238
          %s240 = smul.u32 2, %s18
        $region44: #{tpu_custom_call.1} parent=39 // pred_fallthru
          _
      $region40: #{tpu_custom_call.1} parent=5 // pred_fallthru
        _
      %p241 = scmp.le.s32.totalorder 1, %s18
      %p242 = scmp.lt.s32.totalorder %s18, 3
      %p243 = pnand %p241, %p242
      %p244 = pneg %p243
      // Predicated region
      $region45: #{tpu_custom_call.1} parent=5 // pred_check
        _
      $region46: #{tpu_custom_call.1} parent=5 // pred_check_branch
        %246 = sbr.rel (%p243) target = $region48
      $region47: #{tpu_custom_call.1} parent=5 // pred_region
        %s247 = ssub.s32 %s18, 1
        %s248 = smul.u32 2, %s23
        %p249 = scmp.lt.s32.totalorder %s248, 3
        %s250 = scalar_select %p249, %s248, 3
        %s251 = scalar_lea.vmem %s0, %s250
        %p252 = pneg %p44
        %p253 = pneg %p41
        %p254 = pneg %p65
        %p255 = pneg %p62
        %p256 = pneg %p86
        %p257 = pneg %p83
        %p258 = pneg %p107
        %p259 = pneg %p104
        %p260 = pneg %p128
        %p261 = pneg %p125
        %p262 = pneg %p149
        %p263 = pneg %p146
        %p264 = pneg %p170
        %p265 = pneg %p167
        %p266 = pneg %p196
        %p267 = pneg %p193
        %s268 = sand.u32 %s183, 1
        %s269 = scalar_lea.sflag [#allocation4], %s268
        %s270 = sand.u32 %s183, 1
        %s271 = smul.addr %s270, 2
        %s272 = scalar_lea.vmem [#allocation3], %s271
        %s273 = smul.u32 2, %s23
        %p274 = scmp.lt.s32.totalorder %s273, 3
        %s275 = scalar_select %p274, %s273, 3
        %s276 = scalar_lea.vmem %s0, %s275
        %s277 = smul.u32 2, %s23
        %s278 = smul.u32 2, %s23
        %v279 = vld [vmem:[%s276] sm:$0x3]
        %v280 = vld [vmem:[%s1] sm:$0xff]
        %v281 = vld [vmem:[%s1 + $0x8] sm:$0xff]
        %v282 = vld [vmem:[%s1 + $0x10] sm:$0xff]
        %v283 = vld [vmem:[%s1 + $0x18] sm:$0xff]
        %v284 = vld [vmem:[%s1 + $0x20] sm:$0xff]
        %v285 = vld [vmem:[%s1 + $0x28] sm:$0xff]
        %v286 = vld [vmem:[%s1 + $0x30] sm:$0xff]
        %v287 = vld [vmem:[%s1 + $0x38] sm:$0xff]
        %v288 = vld [vmem:[%s1 + $0x40] sm:$0xff]
        %v289 = vld [vmem:[%s1 + $0x48] sm:$0xff]
        %v290 = vld [vmem:[%s1 + $0x50] sm:$0xff]
        %v291 = vld [vmem:[%s1 + $0x58] sm:$0xff]
        %v292 = vld [vmem:[%s1 + $0x60] sm:$0xff]
        %v293 = vld [vmem:[%s1 + $0x68] sm:$0xff]
        %v294 = vld [vmem:[%s1 + $0x70] sm:$0xff]
        %v295 = vld [vmem:[%s1 + $0x78] sm:$0xff]
        %297 = vset.pattern.permute.xlu0 0
        %298 = vperm.xlu0 %297, %v280
        %v299 = vpop.permute.xlu0 %298
        %302 = vset.pattern.permute.xlu0 0
        %303 = vperm.xlu0 %302, %v281
        %v304 = vpop.permute.xlu0 %303
        %307 = vset.pattern.permute.xlu0 0
        %308 = vperm.xlu0 %307, %v282
        %v309 = vpop.permute.xlu0 %308
        %312 = vset.pattern.permute.xlu0 0
        %313 = vperm.xlu0 %312, %v283
        %v314 = vpop.permute.xlu0 %313
        %317 = vset.pattern.permute.xlu0 0
        %318 = vperm.xlu0 %317, %v284
        %v319 = vpop.permute.xlu0 %318
        %322 = vset.pattern.permute.xlu0 0
        %323 = vperm.xlu0 %322, %v285
        %v324 = vpop.permute.xlu0 %323
        %327 = vset.pattern.permute.xlu0 0
        %328 = vperm.xlu0 %327, %v286
        %v329 = vpop.permute.xlu0 %328
        %332 = vset.pattern.permute.xlu0 0
        %333 = vperm.xlu0 %332, %v287
        %v334 = vpop.permute.xlu0 %333
        %337 = vset.pattern.permute.xlu0 0
        %338 = vperm.xlu0 %337, %v288
        %v339 = vpop.permute.xlu0 %338
        %342 = vset.pattern.permute.xlu0 0
        %343 = vperm.xlu0 %342, %v289
        %v344 = vpop.permute.xlu0 %343
        %347 = vset.pattern.permute.xlu0 0
        %348 = vperm.xlu0 %347, %v290
        %v349 = vpop.permute.xlu0 %348
        %352 = vset.pattern.permute.xlu0 0
        %353 = vperm.xlu0 %352, %v291
        %v354 = vpop.permute.xlu0 %353
        %357 = vset.pattern.permute.xlu0 0
        %358 = vperm.xlu0 %357, %v292
        %v359 = vpop.permute.xlu0 %358
        %362 = vset.pattern.permute.xlu0 0
        %363 = vperm.xlu0 %362, %v293
        %v364 = vpop.permute.xlu0 %363
        %367 = vset.pattern.permute.xlu0 0
        %368 = vperm.xlu0 %367, %v294
        %v369 = vpop.permute.xlu0 %368
        %372 = vset.pattern.permute.xlu0 0
        %373 = vperm.xlu0 %372, %v295
        %v374 = vpop.permute.xlu0 %373
        %v377 = vperm.slane %v279, 0
        %v378 = vperm.slane %v279, 1
        %v381 = vmul.f32 %v299, %v377
        %v382 = vmul.f32 %v299, %v378
        %v383 = vmul.f32 %v304, %v377
        %v384 = vmul.f32 %v304, %v378
        %v385 = vmul.f32 %v309, %v377
        %v386 = vmul.f32 %v309, %v378
        %v387 = vmul.f32 %v314, %v377
        %v388 = vmul.f32 %v314, %v378
        %v389 = vmul.f32 %v319, %v377
        %v390 = vmul.f32 %v319, %v378
        %v391 = vmul.f32 %v324, %v377
        %v392 = vmul.f32 %v324, %v378
        %v393 = vmul.f32 %v329, %v377
        %v394 = vmul.f32 %v329, %v378
        %v395 = vmul.f32 %v334, %v377
        %v396 = vmul.f32 %v334, %v378
        %v397 = vmul.f32 %v339, %v377
        %v398 = vmul.f32 %v339, %v378
        %v399 = vmul.f32 %v344, %v377
        %v400 = vmul.f32 %v344, %v378
        %v401 = vmul.f32 %v349, %v377
        %v402 = vmul.f32 %v349, %v378
        %v403 = vmul.f32 %v354, %v377
        %v404 = vmul.f32 %v354, %v378
        %v405 = vmul.f32 %v359, %v377
        %v406 = vmul.f32 %v359, %v378
        %v407 = vmul.f32 %v364, %v377
        %v408 = vmul.f32 %v364, %v378
        %v409 = vmul.f32 %v369, %v377
        %v410 = vmul.f32 %v369, %v378
        %v411 = vmul.f32 %v374, %v377
        %v412 = vmul.f32 %v374, %v378
        %v413 = vld [vmem:[%s2] sm:$0xff]
        %v414 = vld [vmem:[%s2 + $0x8] sm:$0xff]
        %v415 = vld [vmem:[%s2 + $0x10] sm:$0xff]
        %v416 = vld [vmem:[%s2 + $0x18] sm:$0xff]
        %v417 = vld [vmem:[%s2 + $0x20] sm:$0xff]
        %v418 = vld [vmem:[%s2 + $0x28] sm:$0xff]
        %v419 = vld [vmem:[%s2 + $0x30] sm:$0xff]
        %v420 = vld [vmem:[%s2 + $0x38] sm:$0xff]
        %v421 = vld [vmem:[%s2 + $0x40] sm:$0xff]
        %v422 = vld [vmem:[%s2 + $0x48] sm:$0xff]
        %v423 = vld [vmem:[%s2 + $0x50] sm:$0xff]
        %v424 = vld [vmem:[%s2 + $0x58] sm:$0xff]
        %v425 = vld [vmem:[%s2 + $0x60] sm:$0xff]
        %v426 = vld [vmem:[%s2 + $0x68] sm:$0xff]
        %v427 = vld [vmem:[%s2 + $0x70] sm:$0xff]
        %v428 = vld [vmem:[%s2 + $0x78] sm:$0xff]
        %430 = vset.pattern.permute.xlu0 0
        %431 = vperm.xlu0 %430, %v413
        %v432 = vpop.permute.xlu0 %431
        %435 = vset.pattern.permute.xlu0 0
        %436 = vperm.xlu0 %435, %v414
        %v437 = vpop.permute.xlu0 %436
        %440 = vset.pattern.permute.xlu0 0
        %441 = vperm.xlu0 %440, %v415
        %v442 = vpop.permute.xlu0 %441
        %445 = vset.pattern.permute.xlu0 0
        %446 = vperm.xlu0 %445, %v416
        %v447 = vpop.permute.xlu0 %446
        %450 = vset.pattern.permute.xlu0 0
        %451 = vperm.xlu0 %450, %v417
        %v452 = vpop.permute.xlu0 %451
        %455 = vset.pattern.permute.xlu0 0
        %456 = vperm.xlu0 %455, %v418
        %v457 = vpop.permute.xlu0 %456
        %460 = vset.pattern.permute.xlu0 0
        %461 = vperm.xlu0 %460, %v419
        %v462 = vpop.permute.xlu0 %461
        %465 = vset.pattern.permute.xlu0 0
        %466 = vperm.xlu0 %465, %v420
        %v467 = vpop.permute.xlu0 %466
        %470 = vset.pattern.permute.xlu0 0
        %471 = vperm.xlu0 %470, %v421
        %v472 = vpop.permute.xlu0 %471
        %475 = vset.pattern.permute.xlu0 0
        %476 = vperm.xlu0 %475, %v422
        %v477 = vpop.permute.xlu0 %476
        %480 = vset.pattern.permute.xlu0 0
        %481 = vperm.xlu0 %480, %v423
        %v482 = vpop.permute.xlu0 %481
        %485 = vset.pattern.permute.xlu0 0
        %486 = vperm.xlu0 %485, %v424
        %v487 = vpop.permute.xlu0 %486
        %490 = vset.pattern.permute.xlu0 0
        %491 = vperm.xlu0 %490, %v425
        %v492 = vpop.permute.xlu0 %491
        %495 = vset.pattern.permute.xlu0 0
        %496 = vperm.xlu0 %495, %v426
        %v497 = vpop.permute.xlu0 %496
        %500 = vset.pattern.permute.xlu0 0
        %501 = vperm.xlu0 %500, %v427
        %v502 = vpop.permute.xlu0 %501
        %505 = vset.pattern.permute.xlu0 0
        %506 = vperm.xlu0 %505, %v428
        %v507 = vpop.permute.xlu0 %506
        %v509 = vadd.f32 %v381, %v432
        %v510 = vadd.f32 %v382, %v432
        %v511 = vadd.f32 %v383, %v437
        %v512 = vadd.f32 %v384, %v437
        %v513 = vadd.f32 %v385, %v442
        %v514 = vadd.f32 %v386, %v442
        %v515 = vadd.f32 %v387, %v447
        %v516 = vadd.f32 %v388, %v447
        %v517 = vadd.f32 %v389, %v452
        %v518 = vadd.f32 %v390, %v452
        %v519 = vadd.f32 %v391, %v457
        %v520 = vadd.f32 %v392, %v457
        %v521 = vadd.f32 %v393, %v462
        %v522 = vadd.f32 %v394, %v462
        %v523 = vadd.f32 %v395, %v467
        %v524 = vadd.f32 %v396, %v467
        %v525 = vadd.f32 %v397, %v472
        %v526 = vadd.f32 %v398, %v472
        %v527 = vadd.f32 %v399, %v477
        %v528 = vadd.f32 %v400, %v477
        %v529 = vadd.f32 %v401, %v482
        %v530 = vadd.f32 %v402, %v482
        %v531 = vadd.f32 %v403, %v487
        %v532 = vadd.f32 %v404, %v487
        %v533 = vadd.f32 %v405, %v492
        %v534 = vadd.f32 %v406, %v492
        %v535 = vadd.f32 %v407, %v497
        %v536 = vadd.f32 %v408, %v497
        %v537 = vadd.f32 %v409, %v502
        %v538 = vadd.f32 %v410, %v502
        %v539 = vadd.f32 %v411, %v507
        %v540 = vadd.f32 %v412, %v507
        %v541 = vtanh.pop %v509
        %v542 = vtanh.pop %v510
        %v543 = vtanh.pop %v511
        %v544 = vtanh.pop %v512
        %v545 = vtanh.pop %v513
        %v546 = vtanh.pop %v514
        %v547 = vtanh.pop %v515
        %v548 = vtanh.pop %v516
        %v549 = vtanh.pop %v517
        %v550 = vtanh.pop %v518
        %v551 = vtanh.pop %v519
        %v552 = vtanh.pop %v520
        %v553 = vtanh.pop %v521
        %v554 = vtanh.pop %v522
        %v555 = vtanh.pop %v523
        %v556 = vtanh.pop %v524
        %v557 = vtanh.pop %v525
        %v558 = vtanh.pop %v526
        %v559 = vtanh.pop %v527
        %v560 = vtanh.pop %v528
        %v561 = vtanh.pop %v529
        %v562 = vtanh.pop %v530
        %v563 = vtanh.pop %v531
        %v564 = vtanh.pop %v532
        %v565 = vtanh.pop %v533
        %v566 = vtanh.pop %v534
        %v567 = vtanh.pop %v535
        %v568 = vtanh.pop %v536
        %v569 = vtanh.pop %v537
        %v570 = vtanh.pop %v538
        %v571 = vtanh.pop %v539
        %v572 = vtanh.pop %v540
        %v573 = vld [vmem:[%s3] sm:$0xff]
        %v574 = vld [vmem:[%s3 + $0x8] sm:$0xff]
        %v575 = vld [vmem:[%s3 + $0x10] sm:$0xff]
        %v576 = vld [vmem:[%s3 + $0x18] sm:$0xff]
        %v577 = vld [vmem:[%s3 + $0x20] sm:$0xff]
        %v578 = vld [vmem:[%s3 + $0x28] sm:$0xff]
        %v579 = vld [vmem:[%s3 + $0x30] sm:$0xff]
        %v580 = vld [vmem:[%s3 + $0x38] sm:$0xff]
        %v581 = vld [vmem:[%s3 + $0x40] sm:$0xff]
        %v582 = vld [vmem:[%s3 + $0x48] sm:$0xff]
        %v583 = vld [vmem:[%s3 + $0x50] sm:$0xff]
        %v584 = vld [vmem:[%s3 + $0x58] sm:$0xff]
        %v585 = vld [vmem:[%s3 + $0x60] sm:$0xff]
        %v586 = vld [vmem:[%s3 + $0x68] sm:$0xff]
        %v587 = vld [vmem:[%s3 + $0x70] sm:$0xff]
        %v588 = vld [vmem:[%s3 + $0x78] sm:$0xff]
        %v589 = vld [vmem:[%s4] sm:$0xff]
        %v590 = vld [vmem:[%s4 + $0x8] sm:$0xff]
        %v591 = vld [vmem:[%s4 + $0x10] sm:$0xff]
        %v592 = vld [vmem:[%s4 + $0x18] sm:$0xff]
        %v593 = vld [vmem:[%s4 + $0x20] sm:$0xff]
        %v594 = vld [vmem:[%s4 + $0x28] sm:$0xff]
        %v595 = vld [vmem:[%s4 + $0x30] sm:$0xff]
        %v596 = vld [vmem:[%s4 + $0x38] sm:$0xff]
        %v597 = vld [vmem:[%s4 + $0x40] sm:$0xff]
        %v598 = vld [vmem:[%s4 + $0x48] sm:$0xff]
        %v599 = vld [vmem:[%s4 + $0x50] sm:$0xff]
        %v600 = vld [vmem:[%s4 + $0x58] sm:$0xff]
        %v601 = vld [vmem:[%s4 + $0x60] sm:$0xff]
        %v602 = vld [vmem:[%s4 + $0x68] sm:$0xff]
        %v603 = vld [vmem:[%s4 + $0x70] sm:$0xff]
        %v604 = vld [vmem:[%s4 + $0x78] sm:$0xff]
        %606 = vset.pattern.permute.xlu0 0
        %607 = vperm.xlu0 %606, %v589
        %v608 = vpop.permute.xlu0 %607
        %611 = vset.pattern.permute.xlu0 0
        %612 = vperm.xlu0 %611, %v590
        %v613 = vpop.permute.xlu0 %612
        %616 = vset.pattern.permute.xlu0 0
        %617 = vperm.xlu0 %616, %v591
        %v618 = vpop.permute.xlu0 %617
        %621 = vset.pattern.permute.xlu0 0
        %622 = vperm.xlu0 %621, %v592
        %v623 = vpop.permute.xlu0 %622
        %626 = vset.pattern.permute.xlu0 0
        %627 = vperm.xlu0 %626, %v593
        %v628 = vpop.permute.xlu0 %627
        %631 = vset.pattern.permute.xlu0 0
        %632 = vperm.xlu0 %631, %v594
        %v633 = vpop.permute.xlu0 %632
        %636 = vset.pattern.permute.xlu0 0
        %637 = vperm.xlu0 %636, %v595
        %v638 = vpop.permute.xlu0 %637
        %641 = vset.pattern.permute.xlu0 0
        %642 = vperm.xlu0 %641, %v596
        %v643 = vpop.permute.xlu0 %642
        %646 = vset.pattern.permute.xlu0 0
        %647 = vperm.xlu0 %646, %v597
        %v648 = vpop.permute.xlu0 %647
        %651 = vset.pattern.permute.xlu0 0
        %652 = vperm.xlu0 %651, %v598
        %v653 = vpop.permute.xlu0 %652
        %656 = vset.pattern.permute.xlu0 0
        %657 = vperm.xlu0 %656, %v599
        %v658 = vpop.permute.xlu0 %657
        %661 = vset.pattern.permute.xlu0 0
        %662 = vperm.xlu0 %661, %v600
        %v663 = vpop.permute.xlu0 %662
        %666 = vset.pattern.permute.xlu0 0
        %667 = vperm.xlu0 %666, %v601
        %v668 = vpop.permute.xlu0 %667
        %671 = vset.pattern.permute.xlu0 0
        %672 = vperm.xlu0 %671, %v602
        %v673 = vpop.permute.xlu0 %672
        %676 = vset.pattern.permute.xlu0 0
        %677 = vperm.xlu0 %676, %v603
        %v678 = vpop.permute.xlu0 %677
        %681 = vset.pattern.permute.xlu0 0
        %682 = vperm.xlu0 %681, %v604
        %v683 = vpop.permute.xlu0 %682
        %685 = vmatpush.msra.mxu0 %v571
        %686 = vmatpush.msra.mxu0 %v569
        %687 = vmatpush.msra.mxu0 %v567
        %688 = vmatpush.msra.mxu0 %v565
        %689 = vmatpush.msra.mxu0 %v563
        %690 = vmatpush.msra.mxu0 %v561
        %691 = vmatpush.msra.mxu0 %v559
        %692 = vmatpush.msra.mxu0 %v557
        %693 = vmatpush.msra.mxu0 %v555
        %694 = vmatpush.msra.mxu0 %v553
        %695 = vmatpush.msra.mxu0 %v551
        %696 = vmatpush.msra.mxu0 %v549
        %697 = vmatpush.msra.mxu0 %v547
        %698 = vmatpush.msra.mxu0 %v545
        %699 = vmatpush.msra.mxu0 %v543
        %700 = vmatpush.msra.mxu0 %v541
        %701 = vmatmul.f32.gmra.mxu0 %v573
        %v702 = vpop.f32.mrf.mxu0
        %v703 = vadd.f32 %v608, %v702
        %704 = vmatmul.f32.gmra.mxu0 %v574
        %v705 = vpop.f32.mrf.mxu0
        %v706 = vadd.f32 %v613, %v705
        %707 = vmatmul.f32.gmra.mxu0 %v575
        %v708 = vpop.f32.mrf.mxu0
        %v709 = vadd.f32 %v618, %v708
        %710 = vmatmul.f32.gmra.mxu0 %v576
        %v711 = vpop.f32.mrf.mxu0
        %v712 = vadd.f32 %v623, %v711
        %713 = vmatmul.f32.gmra.mxu0 %v577
        %v714 = vpop.f32.mrf.mxu0
        %v715 = vadd.f32 %v628, %v714
        %716 = vmatmul.f32.gmra.mxu0 %v578
        %v717 = vpop.f32.mrf.mxu0
        %v718 = vadd.f32 %v633, %v717
        %719 = vmatmul.f32.gmra.mxu0 %v579
        %v720 = vpop.f32.mrf.mxu0
        %v721 = vadd.f32 %v638, %v720
        %722 = vmatmul.f32.gmra.mxu0 %v580
        %v723 = vpop.f32.mrf.mxu0
        %v724 = vadd.f32 %v643, %v723
        %725 = vmatmul.f32.gmra.mxu0 %v581
        %v726 = vpop.f32.mrf.mxu0
        %v727 = vadd.f32 %v648, %v726
        %728 = vmatmul.f32.gmra.mxu0 %v582
        %v729 = vpop.f32.mrf.mxu0
        %v730 = vadd.f32 %v653, %v729
        %731 = vmatmul.f32.gmra.mxu0 %v583
        %v732 = vpop.f32.mrf.mxu0
        %v733 = vadd.f32 %v658, %v732
        %734 = vmatmul.f32.gmra.mxu0 %v584
        %v735 = vpop.f32.mrf.mxu0
        %v736 = vadd.f32 %v663, %v735
        %737 = vmatmul.f32.gmra.mxu0 %v585
        %v738 = vpop.f32.mrf.mxu0
        %v739 = vadd.f32 %v668, %v738
        %740 = vmatmul.f32.gmra.mxu0 %v586
        %v741 = vpop.f32.mrf.mxu0
        %v742 = vadd.f32 %v673, %v741
        %743 = vmatmul.f32.gmra.mxu0 %v587
        %v744 = vpop.f32.mrf.mxu0
        %v745 = vadd.f32 %v678, %v744
        %746 = vmatmul.f32.gmra.mxu0 %v588
        %v747 = vpop.f32.mrf.mxu0
        %v748 = vadd.f32 %v683, %v747
        %749 = vdwg.mxu0
        %750 = vmatpush.msra.mxu0 %v572
        %751 = vmatpush.msra.mxu0 %v570
        %752 = vmatpush.msra.mxu0 %v568
        %753 = vmatpush.msra.mxu0 %v566
        %754 = vmatpush.msra.mxu0 %v564
        %755 = vmatpush.msra.mxu0 %v562
        %756 = vmatpush.msra.mxu0 %v560
        %757 = vmatpush.msra.mxu0 %v558
        %758 = vmatpush.msra.mxu0 %v556
        %759 = vmatpush.msra.mxu0 %v554
        %760 = vmatpush.msra.mxu0 %v552
        %761 = vmatpush.msra.mxu0 %v550
        %762 = vmatpush.msra.mxu0 %v548
        %763 = vmatpush.msra.mxu0 %v546
        %764 = vmatpush.msra.mxu0 %v544
        %765 = vmatpush.msra.mxu0 %v542
        %766 = vmatmul.f32.gmra.mxu0 %v573
        %v767 = vpop.f32.mrf.mxu0
        %v768 = vadd.f32 %v608, %v767
        %769 = vmatmul.f32.gmra.mxu0 %v574
        %v770 = vpop.f32.mrf.mxu0
        %v771 = vadd.f32 %v613, %v770
        %772 = vmatmul.f32.gmra.mxu0 %v575
        %v773 = vpop.f32.mrf.mxu0
        %v774 = vadd.f32 %v618, %v773
        %775 = vmatmul.f32.gmra.mxu0 %v576
        %v776 = vpop.f32.mrf.mxu0
        %v777 = vadd.f32 %v623, %v776
        %778 = vmatmul.f32.gmra.mxu0 %v577
        %v779 = vpop.f32.mrf.mxu0
        %v780 = vadd.f32 %v628, %v779
        %781 = vmatmul.f32.gmra.mxu0 %v578
        %v782 = vpop.f32.mrf.mxu0
        %v783 = vadd.f32 %v633, %v782
        %784 = vmatmul.f32.gmra.mxu0 %v579
        %v785 = vpop.f32.mrf.mxu0
        %v786 = vadd.f32 %v638, %v785
        %787 = vmatmul.f32.gmra.mxu0 %v580
        %v788 = vpop.f32.mrf.mxu0
        %v789 = vadd.f32 %v643, %v788
        %790 = vmatmul.f32.gmra.mxu0 %v581
        %v791 = vpop.f32.mrf.mxu0
        %v792 = vadd.f32 %v648, %v791
        %793 = vmatmul.f32.gmra.mxu0 %v582
        %v794 = vpop.f32.mrf.mxu0
        %v795 = vadd.f32 %v653, %v794
        %796 = vmatmul.f32.gmra.mxu0 %v583
        %v797 = vpop.f32.mrf.mxu0
        %v798 = vadd.f32 %v658, %v797
        %799 = vmatmul.f32.gmra.mxu0 %v584
        %v800 = vpop.f32.mrf.mxu0
        %v801 = vadd.f32 %v663, %v800
        %802 = vmatmul.f32.gmra.mxu0 %v585
        %v803 = vpop.f32.mrf.mxu0
        %v804 = vadd.f32 %v668, %v803
        %805 = vmatmul.f32.gmra.mxu0 %v586
        %v806 = vpop.f32.mrf.mxu0
        %v807 = vadd.f32 %v673, %v806
        %808 = vmatmul.f32.gmra.mxu0 %v587
        %v809 = vpop.f32.mrf.mxu0
        %v810 = vadd.f32 %v678, %v809
        %811 = vmatmul.f32.gmra.mxu0 %v588
        %v812 = vpop.f32.mrf.mxu0
        %v813 = vadd.f32 %v683, %v812
        %814 = vdwg.mxu0
        %v815 = vtanh.pop %v703
        %v816 = vtanh.pop %v768
        %v817 = vtanh.pop %v706
        %v818 = vtanh.pop %v771
        %v819 = vtanh.pop %v709
        %v820 = vtanh.pop %v774
        %v821 = vtanh.pop %v712
        %v822 = vtanh.pop %v777
        %v823 = vtanh.pop %v715
        %v824 = vtanh.pop %v780
        %v825 = vtanh.pop %v718
        %v826 = vtanh.pop %v783
        %v827 = vtanh.pop %v721
        %v828 = vtanh.pop %v786
        %v829 = vtanh.pop %v724
        %v830 = vtanh.pop %v789
        %v831 = vtanh.pop %v727
        %v832 = vtanh.pop %v792
        %v833 = vtanh.pop %v730
        %v834 = vtanh.pop %v795
        %v835 = vtanh.pop %v733
        %v836 = vtanh.pop %v798
        %v837 = vtanh.pop %v736
        %v838 = vtanh.pop %v801
        %v839 = vtanh.pop %v739
        %v840 = vtanh.pop %v804
        %v841 = vtanh.pop %v742
        %v842 = vtanh.pop %v807
        %v843 = vtanh.pop %v745
        %v844 = vtanh.pop %v810
        %v845 = vtanh.pop %v748
        %v846 = vtanh.pop %v813
        %v847 = vld [vmem:[%s5] sm:$0x1]
        %v848 = vld [vmem:[#allocation2] sm:$0x1]
        %850 = vset.pattern.permute.xlu0 0
        %851 = vperm.xlu0 %850, %v848
        %v852 = vpop.permute.xlu0 %851
        %v854 = vperm.slane %v852, 0
        %855 = vmatpush.msra.mxu0 %v845
        %856 = vmatpush.msra.mxu0 %v843
        %857 = vmatpush.msra.mxu0 %v841
        %858 = vmatpush.msra.mxu0 %v839
        %859 = vmatpush.msra.mxu0 %v837
        %860 = vmatpush.msra.mxu0 %v835
        %861 = vmatpush.msra.mxu0 %v833
        %862 = vmatpush.msra.mxu0 %v831
        %863 = vmatpush.msra.mxu0 %v829
        %864 = vmatpush.msra.mxu0 %v827
        %865 = vmatpush.msra.mxu0 %v825
        %866 = vmatpush.msra.mxu0 %v823
        %867 = vmatpush.msra.mxu0 %v821
        %868 = vmatpush.msra.mxu0 %v819
        %869 = vmatpush.msra.mxu0 %v817
        %870 = vmatpush.msra.mxu0 %v815
        %871 = vmatmul.f32.gmra.mxu0 %v847
        %v872 = vpop.f32.mrf.mxu0
        %v873 = vadd.f32 %v854, %v872
        %874 = vdwg.mxu0
        %875 = vmatpush.msra.mxu0 %v846
        %876 = vmatpush.msra.mxu0 %v844
        %877 = vmatpush.msra.mxu0 %v842
        %878 = vmatpush.msra.mxu0 %v840
        %879 = vmatpush.msra.mxu0 %v838
        %880 = vmatpush.msra.mxu0 %v836
        %881 = vmatpush.msra.mxu0 %v834
        %882 = vmatpush.msra.mxu0 %v832
        %883 = vmatpush.msra.mxu0 %v830
        %884 = vmatpush.msra.mxu0 %v828
        %885 = vmatpush.msra.mxu0 %v826
        %886 = vmatpush.msra.mxu0 %v824
        %887 = vmatpush.msra.mxu0 %v822
        %888 = vmatpush.msra.mxu0 %v820
        %889 = vmatpush.msra.mxu0 %v818
        %890 = vmatpush.msra.mxu0 %v816
        %891 = vmatmul.f32.gmra.mxu0 %v847
        %v892 = vpop.f32.mrf.mxu0
        %v893 = vadd.f32 %v854, %v892
        %894 = vdwg.mxu0
        %v897 = vrot.slane %v893, 7
        %vm898 = vcmask 1040384
        %v899 = vsel %vm898, %v873, %v897
        %v901 = vlaneseq
        %vm902 = vcmp.ge.s32.totalorder %v901, 0
        %vm903 = vcmp.lt.s32.totalorder %v901, 256
        %vm904 = vmand %vm902, %vm903
        %905 = vst.msk [vmem:[%s272] sm:$0x3] %vm904, %v899
        %s906 = sand.u32 %s183, 1
        %s907 = scalar_lea.sflag [#allocation4], %s906
        %s908 = sand.u32 %s183, 1
        %s909 = smul.addr %s908, 2
        %s910 = scalar_lea.vmem [#allocation3], %s909
        // Predicated region
        $region49: #{tpu_custom_call.1} parent=47 // pred_check
          %p911 = pneg %p193
        $region50: #{tpu_custom_call.1} parent=47 // pred_check_branch
          %913 = sbr.rel (%p911) target = $region52
        $region51: #{tpu_custom_call.1} parent=47 // pred_region
          %s914 = smul.u32 2, %s23
          %916 = vsyncadd %s907, 0
          %s917 = scalar_lea.hbm %s7, %s914
          %s919 = sshll.u32 %s910, 4
          %s920 = int_to_ptr.vmem [resolvable:$true] %s919
          %s921 = sshll.u32 %s917, 4
          %s922 = int_to_ptr.hbm [resolvable:$true] %s921
          %924 = dma.vmem_to_hbm [thread:$0]  %s920, 32, %s922, %s907
        $region52: #{tpu_custom_call.1} parent=47 // pred_fallthru
          _
      $region48: #{tpu_custom_call.1} parent=5 // pred_fallthru
        _
      %p925 = scmp.le.s32.totalorder 2, %s18
      // Predicated region
      $region53: #{tpu_custom_call.1} parent=5 // pred_check
        %p926 = pneg %p925
      $region54: #{tpu_custom_call.1} parent=5 // pred_check_branch
        %928 = sbr.rel (%p926) target = $region56
      $region55: #{tpu_custom_call.1} parent=5 // pred_region
        %s929 = ssub.s32 %s18, 2
        // Predicated region
        $region57: #{tpu_custom_call.1} parent=55 // pred_check
          %p930 = pneg %p199
        $region58: #{tpu_custom_call.1} parent=55 // pred_check_branch
          %932 = sbr.rel (%p930) target = $region60
        $region59: #{tpu_custom_call.1} parent=55 // pred_region
          %s933 = sand.u32 %s184, 1
          %s934 = scalar_lea.sflag [#allocation4], %s933
          %s935 = sand.u32 %s184, 1
          %s936 = smul.addr %s935, 2
          %s937 = scalar_lea.vmem [#allocation3], %s936
          %939 = dma.done %s934, 32
        $region60: #{tpu_custom_call.1} parent=55 // pred_fallthru
          _
      $region56: #{tpu_custom_call.1} parent=5 // pred_fallthru
        _
    $region6: #{tpu_custom_call.1} parent=1 // loop_footer
      %s22 = sadd.s32 1, %s18
    $region7: #{tpu_custom_call.1} parent=1 // loop_footer_branch
      %17 = sbr.rel target = $region3
    $region8: #{tpu_custom_call.1} parent=1 // loop_exit
      _
    %940 = vsyncpa [#allocation4], 1
    %s941 = scalar_lea.sflag [#allocation4], 1
    %942 = vsyncpa %s941, 1

</llo_original>
